<compile_context>
chip_gen: v6e
topology: v6e:2x2x1
jax: 0.10.0
libtpu: 0.0.40
codegen_flags: <defaults>
</compile_context>

<pallas_src>
import jax
import jax.numpy as jnp
from jax.experimental import pallas as pl
from jax.experimental.pallas import tpu as pltpu

NO_OF_EMOTIONS = 6


def _early_cat_self_atten_kernel(vis_ref, voc_ref, emb_ref,
                                 w1v_ref, w1o_ref, w1e_ref, b1_ref,
                                 w2_ref, wfc_ref, bfc_ref, out_ref):
    # vis/voc/emb : (TB, T, C) bf16        w1*_ref : (C, A) bf16
    # b1 : (1, A) f32   w2 : (1, A) f32    wfc : (A, E) f32   bfc : (1, E) f32
    tb, t, c = vis_ref.shape
    a = w1v_ref.shape[1]

    def proj(x_ref, w_ref):
        # Single large-M MXU matmul: (TB*T, C) @ (C, A), f32 accumulation.
        x2d = x_ref[...].reshape(tb * t, c)
        return jnp.dot(x2d, w_ref[...], preferred_element_type=jnp.float32)

    # Fused "early concat": x_cat @ W1 == sum of per-modality chunk matmuls.
    pre = proj(vis_ref, w1v_ref) + proj(voc_ref, w1o_ref) + proj(emb_ref, w1e_ref)
    h2d = jnp.tanh(pre + b1_ref[...])                      # (TB*T, A) f32
    h3d = h2d.reshape(tb, t, a)                            # (TB, T, A)

    # Attention scores over time, lane-dense as (TB, T).
    # b2 omitted: a constant offset on all scores cancels in the softmax.
    scores = jnp.sum(h3d * w2_ref[...][None, :, :], axis=2)  # (TB, T)

    # Numerically stable softmax over the time axis (lanes).
    m = jnp.max(scores, axis=1, keepdims=True)
    e = jnp.exp(scores - m)
    inv_denom = pl.reciprocal(jnp.sum(e, axis=1, keepdims=True), approx=True)
    alpha = e * inv_denom                                    # (TB, T)

    # context = sum_t alpha_t * h_t : VPU multiply + XLU sublane reduce over T
    # (avoids a degenerate M=1 batched MXU matmul).
    ctx = jnp.sum(alpha[:, :, None] * h3d, axis=1)           # (TB, A)

    # Prediction head (E = no_of_emotions; output last dim equals full dim).
    out_ref[...] = (jnp.dot(ctx, wfc_ref[...],
                            preferred_element_type=jnp.float32)
                    + bfc_ref[...])


def init_params(key, enc_hidden_size, self_atten_hid_size,
                no_of_emotions=NO_OF_EMOTIONS):
    """Deterministic parameter init (PyTorch-Linear-style uniform)."""
    d = enc_hidden_size * 3
    a = self_atten_hid_size
    e = no_of_emotions
    ks = jax.random.split(key, 6)

    def unif(k, shape, fan_in):
        bound = 1.0 / jnp.sqrt(fan_in)
        return jax.random.uniform(k, shape, jnp.float32, -bound, bound)

    return {
        'w1':  unif(ks[0], (d, a), d),
        'b1':  unif(ks[1], (1, a), d),
        'w2':  unif(ks[2], (a, 1), a),
        'b2':  unif(ks[3], (1, 1), a),   # cancels in softmax; not passed to kernel
        'wfc': unif(ks[4], (a, e), a),
        'bfc': unif(ks[5], (1, e), a),
    }


def early_cat_self_atten(vocal, vision, emb, params, *, block_b=8):
    """vocal/vision/emb: (B, enc_hidden, T) channels-first."""
    B, C, T = vocal.shape
    A = params['w1'].shape[1]
    E = params['wfc'].shape[1]

    # Keep block shapes legal: batch tile must divide B and be a multiple of 8
    # (or cover the full batch).
    if B % block_b != 0 or block_b % 8 != 0:
        block_b = B

    # Per-modality (B, T, C) bf16 views: no (B, 3C, T) concat materialization;
    # transpose + downcast fuse into one small XLA copy per modality.
    x_vis = jnp.transpose(vision, (0, 2, 1)).astype(jnp.bfloat16)
    x_voc = jnp.transpose(vocal, (0, 2, 1)).astype(jnp.bfloat16)
    x_emb = jnp.transpose(emb, (0, 2, 1)).astype(jnp.bfloat16)

    # Split W1 along the concatenated-feature axis (cat order: vision, vocal, emb).
    w1 = params['w1']
    w1_vis = w1[0 * C:1 * C].astype(jnp.bfloat16)
    w1_voc = w1[1 * C:2 * C].astype(jnp.bfloat16)
    w1_emb = w1[2 * C:3 * C].astype(jnp.bfloat16)
    b1 = params['b1'].astype(jnp.float32)
    w2_row = params['w2'].reshape(1, A).astype(jnp.float32)
    wfc = params['wfc'].astype(jnp.float32)
    bfc = params['bfc'].astype(jnp.float32)

    grid = (B // block_b,)
    x_spec = pl.BlockSpec((block_b, T, C), lambda i: (i, 0, 0))
    full = lambda shape: pl.BlockSpec(shape, lambda i: (0, 0))

    return pl.pallas_call(
        _early_cat_self_atten_kernel,
        out_shape=jax.ShapeDtypeStruct((B, E), jnp.float32),
        grid_spec=pltpu.PrefetchScalarGridSpec(
            num_scalar_prefetch=0,
            grid=grid,
            in_specs=[x_spec, x_spec, x_spec,
                      full((C, A)), full((C, A)), full((C, A)),
                      full((1, A)), full((1, A)),
                      full((A, E)), full((1, E))],
            out_specs=pl.BlockSpec((block_b, E), lambda i: (i, 0)),
        ),
        compiler_params=pltpu.CompilerParams(
            dimension_semantics=("parallel",),
            # Tiles here are tiny; 32 MiB is safely inside physical VMEM on
            # v5e/v6e (128 MiB) and v7x (64 MiB) while allowing double-buffering.
            vmem_limit_bytes=32 * 1024 * 1024,
        ),
    )(x_vis, x_voc, x_emb, w1_vis, w1_voc, w1_emb, b1, w2_row, wfc, bfc)


def _reference(vocal, vision, emb, params):
    """Pure-JAX reference of the same forward pass (mirrors kernel's bf16 inputs)."""
    x = jnp.transpose(jnp.concatenate([vision, vocal, emb], axis=1), (0, 2, 1))
    x = x.astype(jnp.bfloat16).astype(jnp.float32)
    w1 = params['w1'].astype(jnp.bfloat16).astype(jnp.float32)
    h = jnp.tanh(jnp.einsum('btd,da->bta', x, w1) + params['b1'][None])
    scores = jnp.einsum('bta,ao->bto', h, params['w2']) + params['b2'][None]
    m = jnp.max(scores, axis=1, keepdims=True)
    e = jnp.exp(scores - m)
    alpha = e / jnp.sum(e, axis=1, keepdims=True)
    ctx = jnp.sum(alpha * h, axis=1)
    return ctx @ params['wfc'] + params['bfc']


if __name__ == "__main__":
    key = jax.random.PRNGKey(0)
    k_voc, k_vis, k_emb, k_par = jax.random.split(key, 4)

    B, enc_hidden, T = 16, 32, 8      # B=16 -> grid of 2 batch tiles of 8
    self_atten_hid = 32

    vocal = jax.random.normal(k_voc, (B, enc_hidden, T), jnp.float32)
    vision = jax.random.normal(k_vis, (B, enc_hidden, T), jnp.float32)
    emb = jax.random.normal(k_emb, (B, enc_hidden, T), jnp.float32)

    params = init_params(k_par, enc_hidden, self_atten_hid, NO_OF_EMOTIONS)

    out = early_cat_self_atten(vocal, vision, emb, params, block_b=8)
    out = jax.block_until_ready(out)

    ref = _reference(vocal, vision, emb, params)
    assert out.shape == (B, NO_OF_EMOTIONS)
    assert jnp.allclose(out, ref, atol=5e-3, rtol=5e-3), (out, ref)

    print("KERNEL_OK")
</pallas_src>

<mosaic_0001>
module attributes {stable_mosaic.version = 11 : i64} {
  func.func @_early_cat_self_atten_kernel(%arg0: i32, %arg1: memref<8x8x32xbf16, #tpu.memory_space<vmem>>, %arg2: memref<8x8x32xbf16, #tpu.memory_space<vmem>>, %arg3: memref<8x8x32xbf16, #tpu.memory_space<vmem>>, %arg4: memref<32x32xbf16, #tpu.memory_space<vmem>>, %arg5: memref<32x32xbf16, #tpu.memory_space<vmem>>, %arg6: memref<32x32xbf16, #tpu.memory_space<vmem>>, %arg7: memref<1x32xf32, #tpu.memory_space<vmem>>, %arg8: memref<1x32xf32, #tpu.memory_space<vmem>>, %arg9: memref<32x6xf32, #tpu.memory_space<vmem>>, %arg10: memref<1x6xf32, #tpu.memory_space<vmem>>, %arg11: memref<8x6xf32, #tpu.memory_space<vmem>>) attributes {dimension_semantics = [#tpu.dimension_semantics<parallel>], iteration_bounds = array<i64: 2>, scalar_prefetch = 0 : i64, scratch_operands = 0 : i64, tpu.core_type = #tpu.core_type<tc>, window_params = [{transform_indices = @transform_0, window_bounds = array<i64: 8, 8, 32>}, {transform_indices = @transform_1, window_bounds = array<i64: 8, 8, 32>}, {transform_indices = @transform_2, window_bounds = array<i64: 8, 8, 32>}, {pipeline_mode = #tpu.pipeline_mode<synchronous>, transform_indices = @transform_3, window_bounds = array<i64: 32, 32>}, {pipeline_mode = #tpu.pipeline_mode<synchronous>, transform_indices = @transform_4, window_bounds = array<i64: 32, 32>}, {pipeline_mode = #tpu.pipeline_mode<synchronous>, transform_indices = @transform_5, window_bounds = array<i64: 32, 32>}, {pipeline_mode = #tpu.pipeline_mode<synchronous>, transform_indices = @transform_6, window_bounds = array<i64: 1, 32>}, {pipeline_mode = #tpu.pipeline_mode<synchronous>, transform_indices = @transform_7, window_bounds = array<i64: 1, 32>}, {pipeline_mode = #tpu.pipeline_mode<synchronous>, transform_indices = @transform_8, window_bounds = array<i64: 32, 6>}, {pipeline_mode = #tpu.pipeline_mode<synchronous>, transform_indices = @transform_9, window_bounds = array<i64: 1, 6>}, {transform_indices = @transform_10, window_bounds = array<i64: 8, 6>}]} {
    %c0 = arith.constant 0 : index
    %c0_0 = arith.constant 0 : index
    %c0_1 = arith.constant 0 : index
    %0 = vector.load %arg1[%c0, %c0_0, %c0_1] : memref<8x8x32xbf16, #tpu.memory_space<vmem>>, vector<8x8x32xbf16>
    %1 = vector.shape_cast %0 : vector<8x8x32xbf16> to vector<64x32xbf16>
    %c0_2 = arith.constant 0 : index
    %c0_3 = arith.constant 0 : index
    %2 = vector.load %arg4[%c0_2, %c0_3] : memref<32x32xbf16, #tpu.memory_space<vmem>>, vector<32x32xbf16>
    %cst = arith.constant dense<0.000000e+00> : vector<64x32xf32>
    %3 = tpu.matmul %1, %2, %cst {dimension_numbers = #tpu.dot_dimension_numbers<[1], [0], [0], [1], [0, 0, 1, 1], [], []>} : vector<64x32xbf16>, vector<32x32xbf16>, vector<64x32xf32> -> vector<64x32xf32>
    %c0_4 = arith.constant 0 : index
    %c0_5 = arith.constant 0 : index
    %c0_6 = arith.constant 0 : index
    %4 = vector.load %arg2[%c0_4, %c0_5, %c0_6] : memref<8x8x32xbf16, #tpu.memory_space<vmem>>, vector<8x8x32xbf16>
    %5 = vector.shape_cast %4 : vector<8x8x32xbf16> to vector<64x32xbf16>
    %c0_7 = arith.constant 0 : index
    %c0_8 = arith.constant 0 : index
    %6 = vector.load %arg5[%c0_7, %c0_8] : memref<32x32xbf16, #tpu.memory_space<vmem>>, vector<32x32xbf16>
    %cst_9 = arith.constant dense<0.000000e+00> : vector<64x32xf32>
    %7 = tpu.matmul %5, %6, %cst_9 {dimension_numbers = #tpu.dot_dimension_numbers<[1], [0], [0], [1], [0, 0, 1, 1], [], []>} : vector<64x32xbf16>, vector<32x32xbf16>, vector<64x32xf32> -> vector<64x32xf32>
    %8 = arith.addf %3, %7 : vector<64x32xf32>
    %c0_10 = arith.constant 0 : index
    %c0_11 = arith.constant 0 : index
    %c0_12 = arith.constant 0 : index
    %9 = vector.load %arg3[%c0_10, %c0_11, %c0_12] : memref<8x8x32xbf16, #tpu.memory_space<vmem>>, vector<8x8x32xbf16>
    %10 = vector.shape_cast %9 : vector<8x8x32xbf16> to vector<64x32xbf16>
    %c0_13 = arith.constant 0 : index
    %c0_14 = arith.constant 0 : index
    %11 = vector.load %arg6[%c0_13, %c0_14] : memref<32x32xbf16, #tpu.memory_space<vmem>>, vector<32x32xbf16>
    %cst_15 = arith.constant dense<0.000000e+00> : vector<64x32xf32>
    %12 = tpu.matmul %10, %11, %cst_15 {dimension_numbers = #tpu.dot_dimension_numbers<[1], [0], [0], [1], [0, 0, 1, 1], [], []>} : vector<64x32xbf16>, vector<32x32xbf16>, vector<64x32xf32> -> vector<64x32xf32>
    %13 = arith.addf %8, %12 : vector<64x32xf32>
    %c0_16 = arith.constant 0 : index
    %c0_17 = arith.constant 0 : index
    %14 = vector.load %arg7[%c0_16, %c0_17] : memref<1x32xf32, #tpu.memory_space<vmem>>, vector<1x32xf32>
    %15 = vector.broadcast %14 : vector<1x32xf32> to vector<64x32xf32>
    %16 = arith.addf %13, %15 : vector<64x32xf32>
    %17 = math.tanh %16 : vector<64x32xf32>
    %18 = vector.shape_cast %17 : vector<64x32xf32> to vector<8x8x32xf32>
    %c0_18 = arith.constant 0 : index
    %c0_19 = arith.constant 0 : index
    %19 = vector.load %arg8[%c0_18, %c0_19] : memref<1x32xf32, #tpu.memory_space<vmem>>, vector<1x32xf32>
    %20 = vector.shape_cast %19 : vector<1x32xf32> to vector<1x1x32xf32>
    %21 = vector.broadcast %20 : vector<1x1x32xf32> to vector<8x8x32xf32>
    %22 = arith.mulf %18, %21 : vector<8x8x32xf32>
    %cst_20 = arith.constant dense<0.000000e+00> : vector<8x8xf32>
    %23 = vector.multi_reduction <add>, %22, %cst_20 [2] : vector<8x8x32xf32> to vector<8x8xf32>
    %cst_21 = arith.constant dense<0xFF800000> : vector<8xf32>
    %24 = vector.multi_reduction <maximumf>, %23, %cst_21 [1] : vector<8x8xf32> to vector<8xf32>
    %25 = vector.shape_cast %24 : vector<8xf32> to vector<8x1xf32>
    %26 = vector.broadcast %25 : vector<8x1xf32> to vector<8x8xf32>
    %27 = arith.subf %23, %26 : vector<8x8xf32>
    %28 = math.exp %27 : vector<8x8xf32>
    %cst_22 = arith.constant dense<0.000000e+00> : vector<8xf32>
    %29 = vector.multi_reduction <add>, %28, %cst_22 [1] : vector<8x8xf32> to vector<8xf32>
    %30 = vector.shape_cast %29 : vector<8xf32> to vector<8x1xf32>
    %31 = tpu.reciprocal %30 {approx = true} : vector<8x1xf32> -> vector<8x1xf32>
    %32 = vector.broadcast %31 : vector<8x1xf32> to vector<8x8xf32>
    %33 = arith.mulf %28, %32 : vector<8x8xf32>
    %34 = vector.shape_cast %33 : vector<8x8xf32> to vector<8x8x1xf32>
    %35 = vector.broadcast %34 : vector<8x8x1xf32> to vector<8x8x32xf32>
    %36 = arith.mulf %35, %18 : vector<8x8x32xf32>
    %cst_23 = arith.constant dense<0.000000e+00> : vector<8x32xf32>
    %37 = vector.multi_reduction <add>, %36, %cst_23 [1] : vector<8x8x32xf32> to vector<8x32xf32>
    %c0_24 = arith.constant 0 : index
    %c0_25 = arith.constant 0 : index
    %38 = vector.load %arg9[%c0_24, %c0_25] : memref<32x6xf32, #tpu.memory_space<vmem>>, vector<32x6xf32>
    %cst_26 = arith.constant dense<0.000000e+00> : vector<8x6xf32>
    %39 = tpu.matmul %37, %38, %cst_26 {dimension_numbers = #tpu.dot_dimension_numbers<[1], [0], [0], [1], [0, 0, 1, 1], [], []>} : vector<8x32xf32>, vector<32x6xf32>, vector<8x6xf32> -> vector<8x6xf32>
    %c0_27 = arith.constant 0 : index
    %c0_28 = arith.constant 0 : index
    %40 = vector.load %arg10[%c0_27, %c0_28] : memref<1x6xf32, #tpu.memory_space<vmem>>, vector<1x6xf32>
    %41 = vector.broadcast %40 : vector<1x6xf32> to vector<8x6xf32>
    %42 = arith.addf %39, %41 : vector<8x6xf32>
    %c0_29 = arith.constant 0 : index
    %c0_30 = arith.constant 0 : index
    %43 = vector.load %arg11[%c0_29, %c0_30] : memref<8x6xf32, #tpu.memory_space<vmem>>, vector<8x6xf32>
    tpu.vector_store %arg11[%c0_29, %c0_30], %42 {strides = array<i32>} : memref<8x6xf32, #tpu.memory_space<vmem>>, vector<8x6xf32>,
    return
  }
  func.func @transform_0(%arg0: i32) -> (i32, i32, i32) {
    %c0_i32 = arith.constant 0 : i32
    %c0_i32_0 = arith.constant 0 : i32
    %c0_i32_1 = arith.constant 0 : i32
    return %arg0, %c0_i32, %c0_i32_0 : i32, i32, i32
  }
  func.func @transform_1(%arg0: i32) -> (i32, i32, i32) {
    %c0_i32 = arith.constant 0 : i32
    %c0_i32_0 = arith.constant 0 : i32
    %c0_i32_1 = arith.constant 0 : i32
    return %arg0, %c0_i32, %c0_i32_0 : i32, i32, i32
  }
  func.func @transform_2(%arg0: i32) -> (i32, i32, i32) {
    %c0_i32 = arith.constant 0 : i32
    %c0_i32_0 = arith.constant 0 : i32
    %c0_i32_1 = arith.constant 0 : i32
    return %arg0, %c0_i32, %c0_i32_0 : i32, i32, i32
  }
  func.func @transform_3(%arg0: i32) -> (i32, i32) {
    %c0_i32 = arith.constant 0 : i32
    %c0_i32_0 = arith.constant 0 : i32
    %c0_i32_1 = arith.constant 0 : i32
    return %c0_i32, %c0_i32_0 : i32, i32
  }
  func.func @transform_4(%arg0: i32) -> (i32, i32) {
    %c0_i32 = arith.constant 0 : i32
    %c0_i32_0 = arith.constant 0 : i32
    %c0_i32_1 = arith.constant 0 : i32
    return %c0_i32, %c0_i32_0 : i32, i32
  }
  func.func @transform_5(%arg0: i32) -> (i32, i32) {
    %c0_i32 = arith.constant 0 : i32
    %c0_i32_0 = arith.constant 0 : i32
    %c0_i32_1 = arith.constant 0 : i32
    return %c0_i32, %c0_i32_0 : i32, i32
  }
  func.func @transform_6(%arg0: i32) -> (i32, i32) {
    %c0_i32 = arith.constant 0 : i32
    %c0_i32_0 = arith.constant 0 : i32
    %c0_i32_1 = arith.constant 0 : i32
    return %c0_i32, %c0_i32_0 : i32, i32
  }
  func.func @transform_7(%arg0: i32) -> (i32, i32) {
    %c0_i32 = arith.constant 0 : i32
    %c0_i32_0 = arith.constant 0 : i32
    %c0_i32_1 = arith.constant 0 : i32
    return %c0_i32, %c0_i32_0 : i32, i32
  }
  func.func @transform_8(%arg0: i32) -> (i32, i32) {
    %c0_i32 = arith.constant 0 : i32
    %c0_i32_0 = arith.constant 0 : i32
    %c0_i32_1 = arith.constant 0 : i32
    return %c0_i32, %c0_i32_0 : i32, i32
  }
  func.func @transform_9(%arg0: i32) -> (i32, i32) {
    %c0_i32 = arith.constant 0 : i32
    %c0_i32_0 = arith.constant 0 : i32
    %c0_i32_1 = arith.constant 0 : i32
    return %c0_i32, %c0_i32_0 : i32, i32
  }
  func.func @transform_10(%arg0: i32) -> (i32, i32) {
    %c0_i32 = arith.constant 0 : i32
    %c0_i32_0 = arith.constant 0 : i32
    return %arg0, %c0_i32 : i32, i32
  }
}

</mosaic_0001>

<llo_original>
// kernel: tpu_custom_call.1
$region0: #{tpu_custom_call.1}
  #allocation0 [shape = 'u32[]', space=smem, size = 0x4, offset = 0x4, fixed_abs, tag = 'smem constant byte address 0x4 - core index']
  #allocation1 [shape = 'u32[144,128]{1,0:T(1,128)}', space=vmem, size = 0x12000, scoped, tag = 'internal scratch']
  %s0 = inlined_call_operand.hbm [shape: bf16[16,8,32], index: 0, kind: input, shape index: {}]
  %s1 = inlined_call_operand.hbm [shape: bf16[16,8,32], index: 1, kind: input, shape index: {}]
  %s2 = inlined_call_operand.hbm [shape: bf16[16,8,32], index: 2, kind: input, shape index: {}]
  %s3 = inlined_call_operand.vmem [shape: bf16[32,32], index: 3, kind: input, shape index: {}]
  %s4 = inlined_call_operand.vmem [shape: bf16[32,32], index: 4, kind: input, shape index: {}]
  %s5 = inlined_call_operand.vmem [shape: bf16[32,32], index: 5, kind: input, shape index: {}]
  %s6 = inlined_call_operand.vmem [shape: f32[1,32], index: 6, kind: input, shape index: {}]
  %s7 = inlined_call_operand.vmem [shape: f32[1,32], index: 7, kind: input, shape index: {}]
  %s8 = inlined_call_operand.vmem [shape: f32[32,6], index: 8, kind: input, shape index: {}]
  %s9 = inlined_call_operand.vmem [shape: f32[1,6], index: 9, kind: input, shape index: {}]
  %s10 = inlined_call_operand.vmem [shape: f32[16,6], index: 10, kind: output, shape index: {}]
  %s11 = sld [smem:[#allocation0]]
  $region85: #{tpu_custom_call.1} parent=0
    _
  %s13 = ssub.s32 1, %s11
  %s14 = scalar_select 0, %s13, %s11
  $region1: #{tpu_custom_call.1} parent=0
    #allocation2 [shape = 'u8[32768]{0}', space=vmem, size = 0x8000, scoped, tag = 'input window, operand 0']
    #allocation3 [shape = 's32[2]{0}', space=sflag, size = 0x8, scoped, tag = 'scoped memory for tpu_custom_call.1']
    #allocation4 [shape = 'u8[32768]{0}', space=vmem, size = 0x8000, scoped, tag = 'input window, operand 1']
    #allocation5 [shape = 's32[2]{0}', space=sflag, size = 0x8, scoped, tag = 'scoped memory for tpu_custom_call.1']
    #allocation6 [shape = 'u8[32768]{0}', space=vmem, size = 0x8000, scoped, tag = 'input window, operand 2']
    %15 = vsyncpa [#allocation3], 0
    %s16 = scalar_lea.sflag [#allocation3], 1
    %17 = vsyncpa %s16, 0
    %18 = vsyncpa [#allocation5], 0
    %s19 = scalar_lea.sflag [#allocation5], 1
    %20 = vsyncpa %s19, 0
    loop: start=0, step=1, limit=4
    $region2: #{tpu_custom_call.1} parent=1 // loop_pre_header
      _
    $region3: #{tpu_custom_call.1} parent=1 // loop_header
      %s22 = sphi 0, %s26
      %p23 = scmp.ge.s32.totalorder %s22, 4
      %s32 = sphi 0, %s34
      %s35 = sphi 0, %s32
      %s36 = sphi 0, %s35
      %s52 = sphi 0, %s36
      %s58 = sphi 0, %s60
      %s61 = sphi 0, %s58
      %s62 = sphi 0, %s61
      %s78 = sphi 0, %s62
      %s84 = sphi 0, %s86
      %s87 = sphi 0, %s84
      %s88 = sphi 0, %s87
      %s104 = sphi 0, %s88
      %s108 = sphi 0, %s108
      %s110 = sphi 0, %s108
      %s111 = sphi 0, %s110
      %s125 = sphi 0, %s111
      %s129 = sphi 0, %s129
      %s131 = sphi 0, %s129
      %s132 = sphi 0, %s131
      %s146 = sphi 0, %s132
      %s150 = sphi 0, %s150
      %s152 = sphi 0, %s150
      %s153 = sphi 0, %s152
      %s167 = sphi 0, %s153
      %s171 = sphi 0, %s171
      %s173 = sphi 0, %s171
      %s174 = sphi 0, %s173
      %s188 = sphi 0, %s174
      %s192 = sphi 0, %s192
      %s194 = sphi 0, %s192
      %s195 = sphi 0, %s194
      %s209 = sphi 0, %s195
      %s213 = sphi 0, %s213
      %s215 = sphi 0, %s213
      %s216 = sphi 0, %s215
      %s230 = sphi 0, %s216
      %s234 = sphi 0, %s234
      %s236 = sphi 0, %s234
      %s237 = sphi 0, %s236
      %s251 = sphi 0, %s237
      %s257 = sphi 0, %s259
      %s260 = sphi 0, %s257
      %s261 = sphi 0, %s260
      %s277 = sphi 0, %s261
    $region4: #{tpu_custom_call.1} parent=1 // loop_header_branch
      %25 = sbr.rel (%p23) target = $region8
    $region5: #{tpu_custom_call.1} parent=1 // loop_body
      %s27 = ssub.s32 %s22, 1
      %s28 = ssub.s32 %s22, 2
      %s29 = sadd.s32 %s22, 1
      %s30 = ssub.s32 %s22, %s29
      %p31 = scmp.eq.s32.totalorder %s30, 0
      %s33 = sadd.s32 %s32, 1
      %s34 = scalar_select %p31, %s32, %s33
      %p37 = pneg %p31
      %p38 = scmp.eq.s32.totalorder %s22, 1
      %p39 = por %p37, %p38
      %p40 = scmp.ne.s32.totalorder %s32, %s35
      %p41 = scmp.eq.s32.totalorder %s22, 0
      %p42 = por %p40, %p41
      %p43 = scmp.ne.s32.totalorder %s32, %s35
      %p44 = scmp.eq.s32.totalorder %s27, 1
      %p45 = por %p43, %p44
      %p46 = scmp.ne.s32.totalorder %s35, %s36
      %p47 = scmp.eq.s32.totalorder %s27, 0
      %p48 = por %p46, %p47
      %p49 = scmp.ne.s32.totalorder %s35, %s36
      %p50 = scmp.eq.s32.totalorder %s28, 1
      %p51 = por %p49, %p50
      %p53 = scmp.ne.s32.totalorder %s36, %s52
      %p54 = scmp.eq.s32.totalorder %s28, 0
      %p55 = por %p53, %p54
      %s56 = ssub.s32 %s22, %s29
      %p57 = scmp.eq.s32.totalorder %s56, 0
      %s59 = sadd.s32 %s58, 1
      %s60 = scalar_select %p57, %s58, %s59
      %p63 = pneg %p57
      %p64 = scmp.eq.s32.totalorder %s22, 1
      %p65 = por %p63, %p64
      %p66 = scmp.ne.s32.totalorder %s58, %s61
      %p67 = scmp.eq.s32.totalorder %s22, 0
      %p68 = por %p66, %p67
      %p69 = scmp.ne.s32.totalorder %s58, %s61
      %p70 = scmp.eq.s32.totalorder %s27, 1
      %p71 = por %p69, %p70
      %p72 = scmp.ne.s32.totalorder %s61, %s62
      %p73 = scmp.eq.s32.totalorder %s27, 0
      %p74 = por %p72, %p73
      %p75 = scmp.ne.s32.totalorder %s61, %s62
      %p76 = scmp.eq.s32.totalorder %s28, 1
      %p77 = por %p75, %p76
      %p79 = scmp.ne.s32.totalorder %s62, %s78
      %p80 = scmp.eq.s32.totalorder %s28, 0
      %p81 = por %p79, %p80
      %s82 = ssub.s32 %s22, %s29
      %p83 = scmp.eq.s32.totalorder %s82, 0
      %s85 = sadd.s32 %s84, 1
      %s86 = scalar_select %p83, %s84, %s85
      %p89 = pneg %p83
      %p90 = scmp.eq.s32.totalorder %s22, 1
      %p91 = por %p89, %p90
      %p92 = scmp.ne.s32.totalorder %s84, %s87
      %p93 = scmp.eq.s32.totalorder %s22, 0
      %p94 = por %p92, %p93
      %p95 = scmp.ne.s32.totalorder %s84, %s87
      %p96 = scmp.eq.s32.totalorder %s27, 1
      %p97 = por %p95, %p96
      %p98 = scmp.ne.s32.totalorder %s87, %s88
      %p99 = scmp.eq.s32.totalorder %s27, 0
      %p100 = por %p98, %p99
      %p101 = scmp.ne.s32.totalorder %s87, %s88
      %p102 = scmp.eq.s32.totalorder %s28, 1
      %p103 = por %p101, %p102
      %p105 = scmp.ne.s32.totalorder %s88, %s104
      %p106 = scmp.eq.s32.totalorder %s28, 0
      %p107 = por %p105, %p106
      %s109 = sadd.s32 %s108, 1
      %p112 = scmp.eq.s32.totalorder %s22, 1
      %p113 = scmp.ne.s32.totalorder %s108, %s110
      %p114 = scmp.eq.s32.totalorder %s22, 0
      %p115 = por %p113, %p114
      %p116 = scmp.ne.s32.totalorder %s108, %s110
      %p117 = scmp.eq.s32.totalorder %s27, 1
      %p118 = por %p116, %p117
      %p119 = scmp.ne.s32.totalorder %s110, %s111
      %p120 = scmp.eq.s32.totalorder %s27, 0
      %p121 = por %p119, %p120
      %p122 = scmp.ne.s32.totalorder %s110, %s111
      %p123 = scmp.eq.s32.totalorder %s28, 1
      %p124 = por %p122, %p123
      %p126 = scmp.ne.s32.totalorder %s111, %s125
      %p127 = scmp.eq.s32.totalorder %s28, 0
      %p128 = por %p126, %p127
      %s130 = sadd.s32 %s129, 1
      %p133 = scmp.eq.s32.totalorder %s22, 1
      %p134 = scmp.ne.s32.totalorder %s129, %s131
      %p135 = scmp.eq.s32.totalorder %s22, 0
      %p136 = por %p134, %p135
      %p137 = scmp.ne.s32.totalorder %s129, %s131
      %p138 = scmp.eq.s32.totalorder %s27, 1
      %p139 = por %p137, %p138
      %p140 = scmp.ne.s32.totalorder %s131, %s132
      %p141 = scmp.eq.s32.totalorder %s27, 0
      %p142 = por %p140, %p141
      %p143 = scmp.ne.s32.totalorder %s131, %s132
      %p144 = scmp.eq.s32.totalorder %s28, 1
      %p145 = por %p143, %p144
      %p147 = scmp.ne.s32.totalorder %s132, %s146
      %p148 = scmp.eq.s32.totalorder %s28, 0
      %p149 = por %p147, %p148
      %s151 = sadd.s32 %s150, 1
      %p154 = scmp.eq.s32.totalorder %s22, 1
      %p155 = scmp.ne.s32.totalorder %s150, %s152
      %p156 = scmp.eq.s32.totalorder %s22, 0
      %p157 = por %p155, %p156
      %p158 = scmp.ne.s32.totalorder %s150, %s152
      %p159 = scmp.eq.s32.totalorder %s27, 1
      %p160 = por %p158, %p159
      %p161 = scmp.ne.s32.totalorder %s152, %s153
      %p162 = scmp.eq.s32.totalorder %s27, 0
      %p163 = por %p161, %p162
      %p164 = scmp.ne.s32.totalorder %s152, %s153
      %p165 = scmp.eq.s32.totalorder %s28, 1
      %p166 = por %p164, %p165
      %p168 = scmp.ne.s32.totalorder %s153, %s167
      %p169 = scmp.eq.s32.totalorder %s28, 0
      %p170 = por %p168, %p169
      %s172 = sadd.s32 %s171, 1
      %p175 = scmp.eq.s32.totalorder %s22, 1
      %p176 = scmp.ne.s32.totalorder %s171, %s173
      %p177 = scmp.eq.s32.totalorder %s22, 0
      %p178 = por %p176, %p177
      %p179 = scmp.ne.s32.totalorder %s171, %s173
      %p180 = scmp.eq.s32.totalorder %s27, 1
      %p181 = por %p179, %p180
      %p182 = scmp.ne.s32.totalorder %s173, %s174
      %p183 = scmp.eq.s32.totalorder %s27, 0
      %p184 = por %p182, %p183
      %p185 = scmp.ne.s32.totalorder %s173, %s174
      %p186 = scmp.eq.s32.totalorder %s28, 1
      %p187 = por %p185, %p186
      %p189 = scmp.ne.s32.totalorder %s174, %s188
      %p190 = scmp.eq.s32.totalorder %s28, 0
      %p191 = por %p189, %p190
      %s193 = sadd.s32 %s192, 1
      %p196 = scmp.eq.s32.totalorder %s22, 1
      %p197 = scmp.ne.s32.totalorder %s192, %s194
      %p198 = scmp.eq.s32.totalorder %s22, 0
      %p199 = por %p197, %p198
      %p200 = scmp.ne.s32.totalorder %s192, %s194
      %p201 = scmp.eq.s32.totalorder %s27, 1
      %p202 = por %p200, %p201
      %p203 = scmp.ne.s32.totalorder %s194, %s195
      %p204 = scmp.eq.s32.totalorder %s27, 0
      %p205 = por %p203, %p204
      %p206 = scmp.ne.s32.totalorder %s194, %s195
      %p207 = scmp.eq.s32.totalorder %s28, 1
      %p208 = por %p206, %p207
      %p210 = scmp.ne.s32.totalorder %s195, %s209
      %p211 = scmp.eq.s32.totalorder %s28, 0
      %p212 = por %p210, %p211
      %s214 = sadd.s32 %s213, 1
      %p217 = scmp.eq.s32.totalorder %s22, 1
      %p218 = scmp.ne.s32.totalorder %s213, %s215
      %p219 = scmp.eq.s32.totalorder %s22, 0
      %p220 = por %p218, %p219
      %p221 = scmp.ne.s32.totalorder %s213, %s215
      %p222 = scmp.eq.s32.totalorder %s27, 1
      %p223 = por %p221, %p222
      %p224 = scmp.ne.s32.totalorder %s215, %s216
      %p225 = scmp.eq.s32.totalorder %s27, 0
      %p226 = por %p224, %p225
      %p227 = scmp.ne.s32.totalorder %s215, %s216
      %p228 = scmp.eq.s32.totalorder %s28, 1
      %p229 = por %p227, %p228
      %p231 = scmp.ne.s32.totalorder %s216, %s230
      %p232 = scmp.eq.s32.totalorder %s28, 0
      %p233 = por %p231, %p232
      %s235 = sadd.s32 %s234, 1
      %p238 = scmp.eq.s32.totalorder %s22, 1
      %p239 = scmp.ne.s32.totalorder %s234, %s236
      %p240 = scmp.eq.s32.totalorder %s22, 0
      %p241 = por %p239, %p240
      %p242 = scmp.ne.s32.totalorder %s234, %s236
      %p243 = scmp.eq.s32.totalorder %s27, 1
      %p244 = por %p242, %p243
      %p245 = scmp.ne.s32.totalorder %s236, %s237
      %p246 = scmp.eq.s32.totalorder %s27, 0
      %p247 = por %p245, %p246
      %p248 = scmp.ne.s32.totalorder %s236, %s237
      %p249 = scmp.eq.s32.totalorder %s28, 1
      %p250 = por %p248, %p249
      %p252 = scmp.ne.s32.totalorder %s237, %s251
      %p253 = scmp.eq.s32.totalorder %s28, 0
      %p254 = por %p252, %p253
      %s255 = ssub.s32 %s22, %s29
      %p256 = scmp.eq.s32.totalorder %s255, 0
      %s258 = sadd.s32 %s257, 1
      %s259 = scalar_select %p256, %s257, %s258
      %p262 = pneg %p256
      %p263 = scmp.eq.s32.totalorder %s22, 1
      %p264 = por %p262, %p263
      %p265 = scmp.ne.s32.totalorder %s257, %s260
      %p266 = scmp.eq.s32.totalorder %s22, 0
      %p267 = por %p265, %p266
      %p268 = scmp.ne.s32.totalorder %s257, %s260
      %p269 = scmp.eq.s32.totalorder %s27, 1
      %p270 = por %p268, %p269
      %p271 = scmp.ne.s32.totalorder %s260, %s261
      %p272 = scmp.eq.s32.totalorder %s27, 0
      %p273 = por %p271, %p272
      %p274 = scmp.ne.s32.totalorder %s260, %s261
      %p275 = scmp.eq.s32.totalorder %s28, 1
      %p276 = por %p274, %p275
      %p278 = scmp.ne.s32.totalorder %s261, %s277
      %p279 = scmp.eq.s32.totalorder %s28, 0
      %p280 = por %p278, %p279
      %p281 = scmp.le.s32.totalorder 1, %s22
      %p282 = scmp.lt.s32.totalorder %s22, 3
      %p283 = pnand %p281, %p282
      %p284 = pneg %p283
      // Predicated region
      $region9: #{tpu_custom_call.1} parent=5 // pred_check
        _
      $region10: #{tpu_custom_call.1} parent=5 // pred_check_branch
        %286 = sbr.rel (%p283) target = $region12
      $region11: #{tpu_custom_call.1} parent=5 // pred_region
        %s287 = ssub.s32 %s22, 1
        // Predicated region
        $region13: #{tpu_custom_call.1} parent=11 // pred_check
          %p288 = pneg %p121
        $region14: #{tpu_custom_call.1} parent=11 // pred_check_branch
          %290 = sbr.rel (%p288) target = $region16
        $region15: #{tpu_custom_call.1} parent=11 // pred_region
          _
        $region16: #{tpu_custom_call.1} parent=11 // pred_fallthru
          _
        // Predicated region
        $region17: #{tpu_custom_call.1} parent=11 // pred_check
          %p291 = pneg %p142
        $region18: #{tpu_custom_call.1} parent=11 // pred_check_branch
          %293 = sbr.rel (%p291) target = $region20
        $region19: #{tpu_custom_call.1} parent=11 // pred_region
          _
        $region20: #{tpu_custom_call.1} parent=11 // pred_fallthru
          _
        // Predicated region
        $region21: #{tpu_custom_call.1} parent=11 // pred_check
          %p294 = pneg %p163
        $region22: #{tpu_custom_call.1} parent=11 // pred_check_branch
          %296 = sbr.rel (%p294) target = $region24
        $region23: #{tpu_custom_call.1} parent=11 // pred_region
          _
        $region24: #{tpu_custom_call.1} parent=11 // pred_fallthru
          _
        // Predicated region
        $region25: #{tpu_custom_call.1} parent=11 // pred_check
          %p297 = pneg %p184
        $region26: #{tpu_custom_call.1} parent=11 // pred_check_branch
          %299 = sbr.rel (%p297) target = $region28
        $region27: #{tpu_custom_call.1} parent=11 // pred_region
          _
        $region28: #{tpu_custom_call.1} parent=11 // pred_fallthru
          _
        // Predicated region
        $region29: #{tpu_custom_call.1} parent=11 // pred_check
          %p300 = pneg %p205
        $region30: #{tpu_custom_call.1} parent=11 // pred_check_branch
          %302 = sbr.rel (%p300) target = $region32
        $region31: #{tpu_custom_call.1} parent=11 // pred_region
          _
        $region32: #{tpu_custom_call.1} parent=11 // pred_fallthru
          _
        // Predicated region
        $region33: #{tpu_custom_call.1} parent=11 // pred_check
          %p303 = pneg %p226
        $region34: #{tpu_custom_call.1} parent=11 // pred_check_branch
          %305 = sbr.rel (%p303) target = $region36
        $region35: #{tpu_custom_call.1} parent=11 // pred_region
          _
        $region36: #{tpu_custom_call.1} parent=11 // pred_fallthru
          _
        // Predicated region
        $region37: #{tpu_custom_call.1} parent=11 // pred_check
          %p306 = pneg %p247
        $region38: #{tpu_custom_call.1} parent=11 // pred_check_branch
          %308 = sbr.rel (%p306) target = $region40
        $region39: #{tpu_custom_call.1} parent=11 // pred_region
          _
        $region40: #{tpu_custom_call.1} parent=11 // pred_fallthru
          _
      $region12: #{tpu_custom_call.1} parent=5 // pred_fallthru
        _
      %p309 = scmp.lt.s32.totalorder %s22, 2
      // Predicated region
      $region41: #{tpu_custom_call.1} parent=5 // pred_check
        %p310 = pneg %p309
      $region42: #{tpu_custom_call.1} parent=5 // pred_check_branch
        %312 = sbr.rel (%p310) target = $region44
      $region43: #{tpu_custom_call.1} parent=5 // pred_region
        // Predicated region
        $region45: #{tpu_custom_call.1} parent=43 // pred_check
          %p313 = pneg %p42
        $region46: #{tpu_custom_call.1} parent=43 // pred_check_branch
          %315 = sbr.rel (%p313) target = $region48
        $region47: #{tpu_custom_call.1} parent=43 // pred_region
          %s316 = sand.u32 %s32, 1
          %s317 = scalar_lea.sflag [#allocation3], %s316
          %s318 = sand.u32 %s32, 1
          %s319 = smul.addr %s318, 32
          %s320 = scalar_lea.vmem [#allocation2], %s319
          %s321 = smul.u32 8, %s22
          %s323 = ssub.s32 512, 512
          %324 = vsyncadd %s317, %s323
          %s325 = smul.addr %s321, 64
          %s326 = scalar_lea.hbm %s0, %s325
          %s327 = sshll.u32 %s320, 4
          %s328 = int_to_ptr.vmem [resolvable:$true] %s327
          %333 = dma.hbm_to_vmem [thread:$0]  %s326, 512, %s328, %s317, 64, 64, 4
        $region48: #{tpu_custom_call.1} parent=43 // pred_fallthru
          _
        // Predicated region
        $region49: #{tpu_custom_call.1} parent=43 // pred_check
          %p334 = pneg %p68
        $region50: #{tpu_custom_call.1} parent=43 // pred_check_branch
          %336 = sbr.rel (%p334) target = $region52
        $region51: #{tpu_custom_call.1} parent=43 // pred_region
          %s337 = sand.u32 %s22, 1
          %s338 = scalar_lea.sflag [#allocation5], %s337
          %s339 = sand.u32 %s58, 1
          %s340 = smul.addr %s339, 32
          %s341 = scalar_lea.vmem [#allocation4], %s340
          %s342 = smul.u32 8, %s22
          %s344 = ssub.s32 512, 512
          %345 = vsyncadd %s338, %s344
          %s346 = smul.addr %s342, 64
          %s347 = scalar_lea.hbm %s1, %s346
          %s348 = sshll.u32 %s341, 4
          %s349 = int_to_ptr.vmem [resolvable:$true] %s348
          %354 = dma.hbm_to_vmem [thread:$0]  %s347, 512, %s349, %s338, 64, 64, 4
        $region52: #{tpu_custom_call.1} parent=43 // pred_fallthru
          _
        // Predicated region
        $region53: #{tpu_custom_call.1} parent=43 // pred_check
          %p355 = pneg %p94
        $region54: #{tpu_custom_call.1} parent=43 // pred_check_branch
          %357 = sbr.rel (%p355) target = $region56
        $region55: #{tpu_custom_call.1} parent=43 // pred_region
          %s358 = sand.u32 %s22, 1
          %s359 = scalar_lea.sflag [#allocation5], %s358
          %s360 = sand.u32 %s84, 1
          %s361 = smul.addr %s360, 32
          %s362 = scalar_lea.vmem [#allocation6], %s361
          %s363 = smul.u32 8, %s22
          %s365 = ssub.s32 512, 512
          %366 = vsyncadd %s359, %s365
          %s367 = smul.addr %s363, 64
          %s368 = scalar_lea.hbm %s2, %s367
          %s369 = sshll.u32 %s362, 4
          %s370 = int_to_ptr.vmem [resolvable:$true] %s369
          %375 = dma.hbm_to_vmem [thread:$0]  %s368, 512, %s370, %s359, 64, 64, 4
        $region56: #{tpu_custom_call.1} parent=43 // pred_fallthru
          _
      $region44: #{tpu_custom_call.1} parent=5 // pred_fallthru
        _
      %p376 = scmp.le.s32.totalorder 1, %s22
      %p377 = scmp.lt.s32.totalorder %s22, 3
      %p378 = pnand %p376, %p377
      %p379 = pneg %p378
      // Predicated region
      $region57: #{tpu_custom_call.1} parent=5 // pred_check
        _
      $region58: #{tpu_custom_call.1} parent=5 // pred_check_branch
        %381 = sbr.rel (%p378) target = $region60
      $region59: #{tpu_custom_call.1} parent=5 // pred_region
        %s382 = ssub.s32 %s22, 1
        %s383 = sand.u32 %s35, 1
        %s384 = scalar_lea.sflag [#allocation3], %s383
        %s385 = sand.u32 %s35, 1
        %s386 = smul.addr %s385, 32
        %s387 = scalar_lea.vmem [#allocation2], %s386
        // Predicated region
        $region61: #{tpu_custom_call.1} parent=59 // pred_check
          %p388 = pneg %p48
        $region62: #{tpu_custom_call.1} parent=59 // pred_check_branch
          %390 = sbr.rel (%p388) target = $region64
        $region63: #{tpu_custom_call.1} parent=59 // pred_region
          %391 = dma.done %s384, 512
        $region64: #{tpu_custom_call.1} parent=59 // pred_fallthru
          _
        %s392 = sand.u32 %s27, 1
        %s393 = scalar_lea.sflag [#allocation5], %s392
        %s394 = sand.u32 %s61, 1
        %s395 = smul.addr %s394, 32
        %s396 = scalar_lea.vmem [#allocation4], %s395
        // Predicated region
        $region65: #{tpu_custom_call.1} parent=59 // pred_check
          %p397 = pneg %p74
        $region66: #{tpu_custom_call.1} parent=59 // pred_check_branch
          %399 = sbr.rel (%p397) target = $region68
        $region67: #{tpu_custom_call.1} parent=59 // pred_region
          %400 = dma.done %s393, 512
        $region68: #{tpu_custom_call.1} parent=59 // pred_fallthru
          _
        %s401 = sand.u32 %s27, 1
        %s402 = scalar_lea.sflag [#allocation5], %s401
        %s403 = sand.u32 %s87, 1
        %s404 = smul.addr %s403, 32
        %s405 = scalar_lea.vmem [#allocation6], %s404
        // Predicated region
        $region69: #{tpu_custom_call.1} parent=59 // pred_check
          %p406 = pneg %p100
        $region70: #{tpu_custom_call.1} parent=59 // pred_check_branch
          %408 = sbr.rel (%p406) target = $region72
        $region71: #{tpu_custom_call.1} parent=59 // pred_region
          %409 = dma.done %s402, 512
        $region72: #{tpu_custom_call.1} parent=59 // pred_fallthru
          _
        %s410 = sand.u32 %s35, 1
        %s411 = scalar_lea.sflag [#allocation3], %s410
        %s412 = sand.u32 %s35, 1
        %s413 = smul.addr %s412, 32
        %s414 = scalar_lea.vmem [#allocation2], %s413
        %p415 = pneg %p48
        %p416 = pneg %p45
        %s417 = sand.u32 %s27, 1
        %s418 = scalar_lea.sflag [#allocation5], %s417
        %s419 = sand.u32 %s61, 1
        %s420 = smul.addr %s419, 32
        %s421 = scalar_lea.vmem [#allocation4], %s420
        %p422 = pneg %p74
        %p423 = pneg %p71
        %s424 = sand.u32 %s27, 1
        %s425 = scalar_lea.sflag [#allocation5], %s424
        %s426 = sand.u32 %s87, 1
        %s427 = smul.addr %s426, 32
        %s428 = scalar_lea.vmem [#allocation6], %s427
        %p429 = pneg %p100
        %p430 = pneg %p97
        %p431 = pneg %p121
        %p432 = pneg %p118
        %p433 = pneg %p142
        %p434 = pneg %p139
        %p435 = pneg %p163
        %p436 = pneg %p160
        %p437 = pneg %p184
        %p438 = pneg %p181
        %p439 = pneg %p205
        %p440 = pneg %p202
        %p441 = pneg %p226
        %p442 = pneg %p223
        %p443 = pneg %p247
        %p444 = pneg %p244
        %p445 = pneg %p273
        %p446 = pneg %p270
        %p447 = scmp.lt.s32.totalorder %s27, 1
        %s448 = scalar_select %p447, %s27, 1
        %s449 = smul.addr %s448, 8
        %s450 = scalar_lea.vmem %s10, %s449
        %s451 = smul.u32 8, %s27
        %s452 = smul.u32 8, %s27
        %s453 = smul.u32 8, %s27
        %p454 = scmp.lt.s32.totalorder %s27, 1
        %s455 = scalar_select %p454, %s27, 1
        %s456 = smul.addr %s455, 8
        %s457 = scalar_lea.vmem %s10, %s456
        %v459 = vld [vmem:[%s387] sm:$0xf]
        %v460 = vld [vmem:[%s387 + $0x4] sm:$0xf]
        %v461 = vld [vmem:[%s387 + $0x8] sm:$0xf]
        %v462 = vld [vmem:[%s387 + $0xc] sm:$0xf]
        %v463 = vld [vmem:[%s387 + $0x10] sm:$0xf]
        %v464 = vld [vmem:[%s387 + $0x14] sm:$0xf]
        %v465 = vld [vmem:[%s387 + $0x18] sm:$0xf]
        %v466 = vld [vmem:[%s387 + $0x1c] sm:$0xf]
        %v467 = vld [vmem:[%s3] sm:$0xf]
        %v468 = vld [vmem:[%s3 + $0x4] sm:$0xf]
        %v469 = vld [vmem:[%s3 + $0x8] sm:$0xf]
        %v470 = vld [vmem:[%s3 + $0xc] sm:$0xf]
        %v471 = vld [vmem:[%s396] sm:$0xf]
        %v472 = vld [vmem:[%s396 + $0x4] sm:$0xf]
        %v473 = vld [vmem:[%s396 + $0x8] sm:$0xf]
        %v474 = vld [vmem:[%s396 + $0xc] sm:$0xf]
        %v475 = vld [vmem:[%s396 + $0x10] sm:$0xf]
        %v476 = vld [vmem:[%s396 + $0x14] sm:$0xf]
        %v477 = vld [vmem:[%s396 + $0x18] sm:$0xf]
        %v478 = vld [vmem:[%s396 + $0x1c] sm:$0xf]
        %v479 = vld [vmem:[%s4] sm:$0xf]
        %v480 = vld [vmem:[%s4 + $0x4] sm:$0xf]
        %v481 = vld [vmem:[%s4 + $0x8] sm:$0xf]
        %v482 = vld [vmem:[%s4 + $0xc] sm:$0xf]
        %v491 = vunpack.c.l.b16 %v471
        %v492 = vunpack.c.l.b16 %v472
        %v493 = vunpack.c.l.b16 %v473
        %v494 = vunpack.c.l.b16 %v474
        %v495 = vunpack.c.l.b16 %v475
        %v496 = vunpack.c.l.b16 %v476
        %v497 = vunpack.c.l.b16 %v477
        %v498 = vunpack.c.l.b16 %v478
        %v499 = vpack.c.b16 %v492, %v491
        %v500 = vpack.c.b16 %v494, %v493
        %v501 = vpack.c.b16 %v496, %v495
        %v502 = vpack.c.b16 %v498, %v497
        %v507 = vunpack.c.l.b16 %v479
        %v508 = vunpack.c.l.b16 %v480
        %v509 = vunpack.c.l.b16 %v481
        %v510 = vunpack.c.l.b16 %v482
        %v511 = vpack.c.b16 %v508, %v507
        %v512 = vpack.c.b16 %v510, %v509
        %vm515 = vcmask 261120
        %v517 = vsel %vm515, %v499, 0
        %v520 = vsel %vm515, %v500, 0
        %v523 = vsel %vm515, %v501, 0
        %v526 = vsel %vm515, %v502, 0
        %528 = vmatprep.subr.bf16.mxu0 0
        %529 = vmatpush1.bf16.msra.mxu0 0
        %530 = vmatprep.subr.bf16.mxu0 0
        %531 = vmatpush1.bf16.msra.mxu0 0
        %532 = vmatprep.subr.bf16.mxu0 0
        %533 = vmatpush1.bf16.msra.mxu0 0
        %534 = vmatprep.subr.bf16.mxu0 0
        %535 = vmatpush1.bf16.msra.mxu0 0
        %536 = vmatprep.subr.bf16.mxu0 0
        %537 = vmatpush1.bf16.msra.mxu0 0
        %538 = vmatprep.subr.bf16.mxu0 0
        %539 = vmatpush1.bf16.msra.mxu0 0
        %540 = vmatprep.subr.bf16.mxu0 0
        %541 = vmatpush1.bf16.msra.mxu0 %v512
        %542 = vmatprep.subr.bf16.mxu0 0
        %543 = vmatpush1.bf16.msra.mxu0 %v511
        %544 = vmatprep.subr.bf16.mxu0 0
        %545 = vmatpush2.bf16.msra.mxu0 0
        %546 = vmatprep.subr.bf16.mxu0 0
        %547 = vmatpush2.bf16.msra.mxu0 0
        %548 = vmatprep.subr.bf16.mxu0 0
        %549 = vmatpush2.bf16.msra.mxu0 0
        %550 = vmatprep.subr.bf16.mxu0 0
        %551 = vmatpush2.bf16.msra.mxu0 0
        %552 = vmatprep.subr.bf16.mxu0 0
        %553 = vmatpush2.bf16.msra.mxu0 0
        %554 = vmatprep.subr.bf16.mxu0 0
        %555 = vmatpush2.bf16.msra.mxu0 0
        %556 = vmatprep.subr.bf16.mxu0 0
        %557 = vmatpush2.bf16.msra.mxu0 0
        %558 = vmatprep.subr.bf16.mxu0 0
        %559 = vmatpush2.bf16.msra.mxu0 0
        %560 = vmatprep.mubr.bf16.mxu0 0
        %561 = vmatmul.mubr.bf16.gmra.mxu0 %v517
        %v562 = vpop.f32.mrf.mxu0
        %v563 = vadd.f32 0.0, %v562
        %v564 = vpop.f32.mrf.mxu0
        %v565 = vpop.f32.mrf.mxu0
        %v566 = vadd.f32 0.0, %v565
        %v567 = vpop.f32.mrf.mxu0
        %568 = vmatprep.mubr.bf16.mxu0 0
        %569 = vmatmul.mubr.bf16.gmra.mxu0 %v520
        %v570 = vpop.f32.mrf.mxu0
        %v571 = vadd.f32 0.0, %v570
        %v572 = vpop.f32.mrf.mxu0
        %v573 = vpop.f32.mrf.mxu0
        %v574 = vadd.f32 0.0, %v573
        %v575 = vpop.f32.mrf.mxu0
        %576 = vmatprep.mubr.bf16.mxu0 0
        %577 = vmatmul.mubr.bf16.gmra.mxu0 %v523
        %v578 = vpop.f32.mrf.mxu0
        %v579 = vadd.f32 0.0, %v578
        %v580 = vpop.f32.mrf.mxu0
        %v581 = vpop.f32.mrf.mxu0
        %v582 = vadd.f32 0.0, %v581
        %v583 = vpop.f32.mrf.mxu0
        %584 = vmatprep.mubr.bf16.mxu0 0
        %585 = vmatmul.mubr.bf16.gmra.mxu0 %v526
        %v586 = vpop.f32.mrf.mxu0
        %v587 = vadd.f32 0.0, %v586
        %v588 = vpop.f32.mrf.mxu0
        %v589 = vpop.f32.mrf.mxu0
        %v590 = vadd.f32 0.0, %v589
        %v591 = vpop.f32.mrf.mxu0
        %592 = vdwg.mxu0
        %v601 = vunpack.c.l.b16 %v459
        %v602 = vunpack.c.l.b16 %v460
        %v603 = vunpack.c.l.b16 %v461
        %v604 = vunpack.c.l.b16 %v462
        %v605 = vunpack.c.l.b16 %v463
        %v606 = vunpack.c.l.b16 %v464
        %v607 = vunpack.c.l.b16 %v465
        %v608 = vunpack.c.l.b16 %v466
        %v609 = vpack.c.b16 %v602, %v601
        %v610 = vpack.c.b16 %v604, %v603
        %v611 = vpack.c.b16 %v606, %v605
        %v612 = vpack.c.b16 %v608, %v607
        %v617 = vunpack.c.l.b16 %v467
        %v618 = vunpack.c.l.b16 %v468
        %v619 = vunpack.c.l.b16 %v469
        %v620 = vunpack.c.l.b16 %v470
        %v621 = vpack.c.b16 %v618, %v617
        %v622 = vpack.c.b16 %v620, %v619
        %v626 = vsel %vm515, %v609, 0
        %v629 = vsel %vm515, %v610, 0
        %v632 = vsel %vm515, %v611, 0
        %v635 = vsel %vm515, %v612, 0
        %637 = vmatprep.subr.bf16.mxu0 0
        %638 = vmatpush1.bf16.msra.mxu0 0
        %639 = vmatprep.subr.bf16.mxu0 0
        %640 = vmatpush1.bf16.msra.mxu0 0
        %641 = vmatprep.subr.bf16.mxu0 0
        %642 = vmatpush1.bf16.msra.mxu0 0
        %643 = vmatprep.subr.bf16.mxu0 0
        %644 = vmatpush1.bf16.msra.mxu0 0
        %645 = vmatprep.subr.bf16.mxu0 0
        %646 = vmatpush1.bf16.msra.mxu0 0
        %647 = vmatprep.subr.bf16.mxu0 0
        %648 = vmatpush1.bf16.msra.mxu0 0
        %649 = vmatprep.subr.bf16.mxu0 0
        %650 = vmatpush1.bf16.msra.mxu0 %v622
        %651 = vmatprep.subr.bf16.mxu0 0
        %652 = vmatpush1.bf16.msra.mxu0 %v621
        %653 = vmatprep.subr.bf16.mxu0 0
        %654 = vmatpush2.bf16.msra.mxu0 0
        %655 = vmatprep.subr.bf16.mxu0 0
        %656 = vmatpush2.bf16.msra.mxu0 0
        %657 = vmatprep.subr.bf16.mxu0 0
        %658 = vmatpush2.bf16.msra.mxu0 0
        %659 = vmatprep.subr.bf16.mxu0 0
        %660 = vmatpush2.bf16.msra.mxu0 0
        %661 = vmatprep.subr.bf16.mxu0 0
        %662 = vmatpush2.bf16.msra.mxu0 0
        %663 = vmatprep.subr.bf16.mxu0 0
        %664 = vmatpush2.bf16.msra.mxu0 0
        %665 = vmatprep.subr.bf16.mxu0 0
        %666 = vmatpush2.bf16.msra.mxu0 0
        %667 = vmatprep.subr.bf16.mxu0 0
        %668 = vmatpush2.bf16.msra.mxu0 0
        %669 = vmatprep.mubr.bf16.mxu0 0
        %670 = vmatmul.mubr.bf16.gmra.mxu0 %v626
        %v671 = vpop.f32.mrf.mxu0
        %v672 = vadd.f32 %v563, %v671
        %v673 = vpop.f32.mrf.mxu0
        %v674 = vpop.f32.mrf.mxu0
        %v675 = vadd.f32 %v566, %v674
        %v676 = vpop.f32.mrf.mxu0
        %677 = vmatprep.mubr.bf16.mxu0 0
        %678 = vmatmul.mubr.bf16.gmra.mxu0 %v629
        %v679 = vpop.f32.mrf.mxu0
        %v680 = vadd.f32 %v571, %v679
        %v681 = vpop.f32.mrf.mxu0
        %v682 = vpop.f32.mrf.mxu0
        %v683 = vadd.f32 %v574, %v682
        %v684 = vpop.f32.mrf.mxu0
        %685 = vmatprep.mubr.bf16.mxu0 0
        %686 = vmatmul.mubr.bf16.gmra.mxu0 %v632
        %v687 = vpop.f32.mrf.mxu0
        %v688 = vadd.f32 %v579, %v687
        %v689 = vpop.f32.mrf.mxu0
        %v690 = vpop.f32.mrf.mxu0
        %v691 = vadd.f32 %v582, %v690
        %v692 = vpop.f32.mrf.mxu0
        %693 = vmatprep.mubr.bf16.mxu0 0
        %694 = vmatmul.mubr.bf16.gmra.mxu0 %v635
        %v695 = vpop.f32.mrf.mxu0
        %v696 = vadd.f32 %v587, %v695
        %v697 = vpop.f32.mrf.mxu0
        %v698 = vpop.f32.mrf.mxu0
        %v699 = vadd.f32 %v590, %v698
        %v700 = vpop.f32.mrf.mxu0
        %701 = vdwg.mxu0
        %v702 = vld [vmem:[%s405] sm:$0xf]
        %v703 = vld [vmem:[%s405 + $0x4] sm:$0xf]
        %v704 = vld [vmem:[%s405 + $0x8] sm:$0xf]
        %v705 = vld [vmem:[%s405 + $0xc] sm:$0xf]
        %v706 = vld [vmem:[%s405 + $0x10] sm:$0xf]
        %v707 = vld [vmem:[%s405 + $0x14] sm:$0xf]
        %v708 = vld [vmem:[%s405 + $0x18] sm:$0xf]
        %v709 = vld [vmem:[%s405 + $0x1c] sm:$0xf]
        %v710 = vld [vmem:[%s5] sm:$0xf]
        %v711 = vld [vmem:[%s5 + $0x4] sm:$0xf]
        %v712 = vld [vmem:[%s5 + $0x8] sm:$0xf]
        %v713 = vld [vmem:[%s5 + $0xc] sm:$0xf]
        %v722 = vunpack.c.l.b16 %v702
        %v723 = vunpack.c.l.b16 %v703
        %v724 = vunpack.c.l.b16 %v704
        %v725 = vunpack.c.l.b16 %v705
        %v726 = vunpack.c.l.b16 %v706
        %v727 = vunpack.c.l.b16 %v707
        %v728 = vunpack.c.l.b16 %v708
        %v729 = vunpack.c.l.b16 %v709
        %v730 = vpack.c.b16 %v723, %v722
        %v731 = vpack.c.b16 %v725, %v724
        %v732 = vpack.c.b16 %v727, %v726
        %v733 = vpack.c.b16 %v729, %v728
        %v738 = vunpack.c.l.b16 %v710
        %v739 = vunpack.c.l.b16 %v711
        %v740 = vunpack.c.l.b16 %v712
        %v741 = vunpack.c.l.b16 %v713
        %v742 = vpack.c.b16 %v739, %v738
        %v743 = vpack.c.b16 %v741, %v740
        %v747 = vsel %vm515, %v730, 0
        %v750 = vsel %vm515, %v731, 0
        %v753 = vsel %vm515, %v732, 0
        %v756 = vsel %vm515, %v733, 0
        %758 = vmatprep.subr.bf16.mxu0 0
        %759 = vmatpush1.bf16.msra.mxu0 0
        %760 = vmatprep.subr.bf16.mxu0 0
        %761 = vmatpush1.bf16.msra.mxu0 0
        %762 = vmatprep.subr.bf16.mxu0 0
        %763 = vmatpush1.bf16.msra.mxu0 0
        %764 = vmatprep.subr.bf16.mxu0 0
        %765 = vmatpush1.bf16.msra.mxu0 0
        %766 = vmatprep.subr.bf16.mxu0 0
        %767 = vmatpush1.bf16.msra.mxu0 0
        %768 = vmatprep.subr.bf16.mxu0 0
        %769 = vmatpush1.bf16.msra.mxu0 0
        %770 = vmatprep.subr.bf16.mxu0 0
        %771 = vmatpush1.bf16.msra.mxu0 %v743
        %772 = vmatprep.subr.bf16.mxu0 0
        %773 = vmatpush1.bf16.msra.mxu0 %v742
        %774 = vmatprep.subr.bf16.mxu0 0
        %775 = vmatpush2.bf16.msra.mxu0 0
        %776 = vmatprep.subr.bf16.mxu0 0
        %777 = vmatpush2.bf16.msra.mxu0 0
        %778 = vmatprep.subr.bf16.mxu0 0
        %779 = vmatpush2.bf16.msra.mxu0 0
        %780 = vmatprep.subr.bf16.mxu0 0
        %781 = vmatpush2.bf16.msra.mxu0 0
        %782 = vmatprep.subr.bf16.mxu0 0
        %783 = vmatpush2.bf16.msra.mxu0 0
        %784 = vmatprep.subr.bf16.mxu0 0
        %785 = vmatpush2.bf16.msra.mxu0 0
        %786 = vmatprep.subr.bf16.mxu0 0
        %787 = vmatpush2.bf16.msra.mxu0 0
        %788 = vmatprep.subr.bf16.mxu0 0
        %789 = vmatpush2.bf16.msra.mxu0 0
        %790 = vmatprep.mubr.bf16.mxu0 0
        %791 = vmatmul.mubr.bf16.gmra.mxu0 %v747
        %v792 = vpop.f32.mrf.mxu0
        %v793 = vadd.f32 0.0, %v792
        %v794 = vpop.f32.mrf.mxu0
        %v795 = vpop.f32.mrf.mxu0
        %v796 = vadd.f32 0.0, %v795
        %v797 = vpop.f32.mrf.mxu0
        %798 = vmatprep.mubr.bf16.mxu0 0
        %799 = vmatmul.mubr.bf16.gmra.mxu0 %v750
        %v800 = vpop.f32.mrf.mxu0
        %v801 = vadd.f32 0.0, %v800
        %v802 = vpop.f32.mrf.mxu0
        %v803 = vpop.f32.mrf.mxu0
        %v804 = vadd.f32 0.0, %v803
        %v805 = vpop.f32.mrf.mxu0
        %806 = vmatprep.mubr.bf16.mxu0 0
        %807 = vmatmul.mubr.bf16.gmra.mxu0 %v753
        %v808 = vpop.f32.mrf.mxu0
        %v809 = vadd.f32 0.0, %v808
        %v810 = vpop.f32.mrf.mxu0
        %v811 = vpop.f32.mrf.mxu0
        %v812 = vadd.f32 0.0, %v811
        %v813 = vpop.f32.mrf.mxu0
        %814 = vmatprep.mubr.bf16.mxu0 0
        %815 = vmatmul.mubr.bf16.gmra.mxu0 %v756
        %v816 = vpop.f32.mrf.mxu0
        %v817 = vadd.f32 0.0, %v816
        %v818 = vpop.f32.mrf.mxu0
        %v819 = vpop.f32.mrf.mxu0
        %v820 = vadd.f32 0.0, %v819
        %v821 = vpop.f32.mrf.mxu0
        %822 = vdwg.mxu0
        %v823 = vadd.f32 %v672, %v793
        %v824 = vadd.f32 %v675, %v796
        %v825 = vadd.f32 %v680, %v801
        %v826 = vadd.f32 %v683, %v804
        %v827 = vadd.f32 %v688, %v809
        %v828 = vadd.f32 %v691, %v812
        %v829 = vadd.f32 %v696, %v817
        %v830 = vadd.f32 %v699, %v820
        %v831 = vld [vmem:[%s6] sm:$0x1]
        %v833 = vlaneseq
        %v834 = vshrl.u32 %v833, 7
        %v835 = vsub.s32 0, %v834
        %v836 = vrot.slane %v831, %v835
        %v838 = vadd.f32 %v823, %v836
        %v839 = vadd.f32 %v824, %v836
        %v840 = vadd.f32 %v825, %v836
        %v841 = vadd.f32 %v826, %v836
        %v842 = vadd.f32 %v827, %v836
        %v843 = vadd.f32 %v828, %v836
        %v844 = vadd.f32 %v829, %v836
        %v845 = vadd.f32 %v830, %v836
        %v846 = vtanh.pop %v838
        %v847 = vtanh.pop %v839
        %v848 = vtanh.pop %v840
        %v849 = vtanh.pop %v841
        %v850 = vtanh.pop %v842
        %v851 = vtanh.pop %v843
        %v852 = vtanh.pop %v844
        %v853 = vtanh.pop %v845
        %v854 = vld [vmem:[%s7] sm:$0x1]
        %v856 = vlaneseq
        %v857 = vshrl.u32 %v856, 7
        %v858 = vsub.s32 0, %v857
        %v859 = vrot.slane %v854, %v858
        %v861 = vmul.f32 %v846, %v859
        %v862 = vmul.f32 %v847, %v859
        %v863 = vmul.f32 %v848, %v859
        %v864 = vmul.f32 %v849, %v859
        %v865 = vmul.f32 %v850, %v859
        %v866 = vmul.f32 %v851, %v859
        %v867 = vmul.f32 %v852, %v859
        %v868 = vmul.f32 %v853, %v859
        %v869 = vsel %vm515, %v861, 0.0
        %870 = vadd.xlane.f32.xlu0 %v869
        %v871 = vpop.xlane.xlu0 %870
        %v872 = vsel %vm515, %v862, 0.0
        %873 = vadd.xlane.f32.xlu0 %v872
        %v874 = vpop.xlane.xlu0 %873
        %v875 = vsel %vm515, %v863, 0.0
        %876 = vadd.xlane.f32.xlu0 %v875
        %v877 = vpop.xlane.xlu0 %876
        %v878 = vsel %vm515, %v864, 0.0
        %879 = vadd.xlane.f32.xlu0 %v878
        %v880 = vpop.xlane.xlu0 %879
        %v881 = vsel %vm515, %v865, 0.0
        %882 = vadd.xlane.f32.xlu0 %v881
        %v883 = vpop.xlane.xlu0 %882
        %v884 = vsel %vm515, %v866, 0.0
        %885 = vadd.xlane.f32.xlu0 %v884
        %v886 = vpop.xlane.xlu0 %885
        %v887 = vsel %vm515, %v867, 0.0
        %888 = vadd.xlane.f32.xlu0 %v887
        %v889 = vpop.xlane.xlu0 %888
        %v890 = vsel %vm515, %v868, 0.0
        %891 = vadd.xlane.f32.xlu0 %v890
        %v892 = vpop.xlane.xlu0 %891
        %v901 = vlaneseq
        %v902 = vand.u32 %v901, 127
        %v903 = vlaneseq
        %v904 = vshrl.u32 %v903, 7
        %v905 = vsub.s32 %v902, %v904
        %v906 = vrot.slane %v871, %v905
        %v907 = vlaneseq
        %v908 = vshrl.u32 %v907, 7
        %v909 = vsub.s32 %v902, %v908
        %v910 = vrot.slane %v874, %v909
        %v911 = vlaneseq
        %v912 = vshrl.u32 %v911, 7
        %v913 = vsub.s32 %v902, %v912
        %v914 = vrot.slane %v877, %v913
        %v915 = vlaneseq
        %v916 = vshrl.u32 %v915, 7
        %v917 = vsub.s32 %v902, %v916
        %v918 = vrot.slane %v880, %v917
        %v919 = vlaneseq
        %v920 = vshrl.u32 %v919, 7
        %v921 = vsub.s32 %v902, %v920
        %v922 = vrot.slane %v883, %v921
        %v923 = vlaneseq
        %v924 = vshrl.u32 %v923, 7
        %v925 = vsub.s32 %v902, %v924
        %v926 = vrot.slane %v886, %v925
        %v927 = vlaneseq
        %v928 = vshrl.u32 %v927, 7
        %v929 = vsub.s32 %v902, %v928
        %v930 = vrot.slane %v889, %v929
        %v931 = vlaneseq
        %v932 = vshrl.u32 %v931, 7
        %v933 = vsub.s32 %v902, %v932
        %v934 = vrot.slane %v892, %v933
        %vm935 = vcmask 1041409
        %v936 = vsel %vm935, %v910, %v906
        %vm937 = vcmask 1042434
        %v938 = vsel %vm937, %v914, %v936
        %vm939 = vcmask 1043459
        %v940 = vsel %vm939, %v918, %v938
        %vm941 = vcmask 1044484
        %v942 = vsel %vm941, %v922, %v940
        %vm943 = vcmask 1045509
        %v944 = vsel %vm943, %v926, %v942
        %vm945 = vcmask 1046534
        %v946 = vsel %vm945, %v930, %v944
        %vm947 = vcmask 1047559
        %v948 = vsel %vm947, %v934, %v946
        %vm950 = vcmask 64512
        %v951 = vsel %vm950, %v948, -inf
        %952 = vmax.xlane.f32.xlu0 %v951
        %v953 = vpop.xlane.xlu0 %952
        %v955 = vlaneseq
        %v956 = vshrl.u32 %v955, 7
        %v957 = vsub.s32 0, %v956
        %v958 = vrot.slane %v953, %v957
        %v959 = vlaneseq
        %v960 = vshrl.u32 %v959, 7
        %v961 = vsub.s32 1, %v960
        %v962 = vrot.slane %v953, %v961
        %v963 = vlaneseq
        %v964 = vshrl.u32 %v963, 7
        %v965 = vsub.s32 2, %v964
        %v966 = vrot.slane %v953, %v965
        %v967 = vlaneseq
        %v968 = vshrl.u32 %v967, 7
        %v969 = vsub.s32 3, %v968
        %v970 = vrot.slane %v953, %v969
        %v971 = vlaneseq
        %v972 = vshrl.u32 %v971, 7
        %v973 = vsub.s32 4, %v972
        %v974 = vrot.slane %v953, %v973
        %v975 = vlaneseq
        %v976 = vshrl.u32 %v975, 7
        %v977 = vsub.s32 5, %v976
        %v978 = vrot.slane %v953, %v977
        %v979 = vlaneseq
        %v980 = vshrl.u32 %v979, 7
        %v981 = vsub.s32 6, %v980
        %v982 = vrot.slane %v953, %v981
        %v983 = vlaneseq
        %v984 = vshrl.u32 %v983, 7
        %v985 = vsub.s32 7, %v984
        %v986 = vrot.slane %v953, %v985
        %v995 = vsub.f32 %v871, %v958
        %v996 = vsub.f32 %v874, %v962
        %v997 = vsub.f32 %v877, %v966
        %v998 = vsub.f32 %v880, %v970
        %v999 = vsub.f32 %v883, %v974
        %v1000 = vsub.f32 %v886, %v978
        %v1001 = vsub.f32 %v889, %v982
        %v1002 = vsub.f32 %v892, %v986
        %v1003 = vmul.f32 %v995, 1.442695
        %v1004 = vpow.pop %v1003
        %v1005 = vmul.f32 %v996, 1.442695
        %v1006 = vpow.pop %v1005
        %v1007 = vmul.f32 %v997, 1.442695
        %v1008 = vpow.pop %v1007
        %v1009 = vmul.f32 %v998, 1.442695
        %v1010 = vpow.pop %v1009
        %v1011 = vmul.f32 %v999, 1.442695
        %v1012 = vpow.pop %v1011
        %v1013 = vmul.f32 %v1000, 1.442695
        %v1014 = vpow.pop %v1013
        %v1015 = vmul.f32 %v1001, 1.442695
        %v1016 = vpow.pop %v1015
        %v1017 = vmul.f32 %v1002, 1.442695
        %v1018 = vpow.pop %v1017
        %1027 = vset.pattern.permute.xlu0 0
        %1028 = vperm.xlu0 %1027, %v1004
        %v1029 = vpop.permute.xlu0 %1028
        %1030 = vset.pattern.permute.xlu0 0
        %1031 = vperm.xlu0 %1030, %v1006
        %v1032 = vpop.permute.xlu0 %1031
        %1033 = vset.pattern.permute.xlu0 0
        %1034 = vperm.xlu0 %1033, %v1008
        %v1035 = vpop.permute.xlu0 %1034
        %1036 = vset.pattern.permute.xlu0 0
        %1037 = vperm.xlu0 %1036, %v1010
        %v1038 = vpop.permute.xlu0 %1037
        %1039 = vset.pattern.permute.xlu0 0
        %1040 = vperm.xlu0 %1039, %v1012
        %v1041 = vpop.permute.xlu0 %1040
        %1042 = vset.pattern.permute.xlu0 0
        %1043 = vperm.xlu0 %1042, %v1014
        %v1044 = vpop.permute.xlu0 %1043
        %1045 = vset.pattern.permute.xlu0 0
        %1046 = vperm.xlu0 %1045, %v1016
        %v1047 = vpop.permute.xlu0 %1046
        %1048 = vset.pattern.permute.xlu0 0
        %1049 = vperm.xlu0 %1048, %v1018
        %v1050 = vpop.permute.xlu0 %1049
        %v1051 = vlaneseq
        %v1052 = vshrl.u32 %v1051, 7
        %v1053 = vsub.s32 %v902, %v1052
        %v1054 = vrot.slane %v1029, %v1053
        %v1055 = vlaneseq
        %v1056 = vshrl.u32 %v1055, 7
        %v1057 = vsub.s32 %v902, %v1056
        %v1058 = vrot.slane %v1032, %v1057
        %v1059 = vlaneseq
        %v1060 = vshrl.u32 %v1059, 7
        %v1061 = vsub.s32 %v902, %v1060
        %v1062 = vrot.slane %v1035, %v1061
        %v1063 = vlaneseq
        %v1064 = vshrl.u32 %v1063, 7
        %v1065 = vsub.s32 %v902, %v1064
        %v1066 = vrot.slane %v1038, %v1065
        %v1067 = vlaneseq
        %v1068 = vshrl.u32 %v1067, 7
        %v1069 = vsub.s32 %v902, %v1068
        %v1070 = vrot.slane %v1041, %v1069
        %v1071 = vlaneseq
        %v1072 = vshrl.u32 %v1071, 7
        %v1073 = vsub.s32 %v902, %v1072
        %v1074 = vrot.slane %v1044, %v1073
        %v1075 = vlaneseq
        %v1076 = vshrl.u32 %v1075, 7
        %v1077 = vsub.s32 %v902, %v1076
        %v1078 = vrot.slane %v1047, %v1077
        %v1079 = vlaneseq
        %v1080 = vshrl.u32 %v1079, 7
        %v1081 = vsub.s32 %v902, %v1080
        %v1082 = vrot.slane %v1050, %v1081
        %v1083 = vsel %vm935, %v1058, %v1054
        %v1084 = vsel %vm937, %v1062, %v1083
        %v1085 = vsel %vm939, %v1066, %v1084
        %v1086 = vsel %vm941, %v1070, %v1085
        %v1087 = vsel %vm943, %v1074, %v1086
        %v1088 = vsel %vm945, %v1078, %v1087
        %v1089 = vsel %vm947, %v1082, %v1088
        %v1091 = vsel %vm950, %v1089, 0.0
        %1092 = vadd.xlane.f32.xlu0 %v1091
        %v1093 = vpop.xlane.xlu0 %1092
        %v1094 = vrcp.pop %v1093
        %v1096 = vlaneseq
        %v1097 = vshrl.u32 %v1096, 7
        %v1098 = vsub.s32 0, %v1097
        %v1099 = vrot.slane %v1094, %v1098
        %v1100 = vlaneseq
        %v1101 = vshrl.u32 %v1100, 7
        %v1102 = vsub.s32 1, %v1101
        %v1103 = vrot.slane %v1094, %v1102
        %v1104 = vlaneseq
        %v1105 = vshrl.u32 %v1104, 7
        %v1106 = vsub.s32 2, %v1105
        %v1107 = vrot.slane %v1094, %v1106
        %v1108 = vlaneseq
        %v1109 = vshrl.u32 %v1108, 7
        %v1110 = vsub.s32 3, %v1109
        %v1111 = vrot.slane %v1094, %v1110
        %v1112 = vlaneseq
        %v1113 = vshrl.u32 %v1112, 7
        %v1114 = vsub.s32 4, %v1113
        %v1115 = vrot.slane %v1094, %v1114
        %v1116 = vlaneseq
        %v1117 = vshrl.u32 %v1116, 7
        %v1118 = vsub.s32 5, %v1117
        %v1119 = vrot.slane %v1094, %v1118
        %v1120 = vlaneseq
        %v1121 = vshrl.u32 %v1120, 7
        %v1122 = vsub.s32 6, %v1121
        %v1123 = vrot.slane %v1094, %v1122
        %v1124 = vlaneseq
        %v1125 = vshrl.u32 %v1124, 7
        %v1126 = vsub.s32 7, %v1125
        %v1127 = vrot.slane %v1094, %v1126
        %v1136 = vmul.f32 %v1004, %v1099
        %v1137 = vmul.f32 %v1006, %v1103
        %v1138 = vmul.f32 %v1008, %v1107
        %v1139 = vmul.f32 %v1010, %v1111
        %v1140 = vmul.f32 %v1012, %v1115
        %v1141 = vmul.f32 %v1014, %v1119
        %v1142 = vmul.f32 %v1016, %v1123
        %v1143 = vmul.f32 %v1018, %v1127
        %1145 = vset.pattern.permute.xlu0 0
        %1146 = vperm.xlu0 %1145, %v1136
        %v1147 = vpop.permute.xlu0 %1146
        %1150 = vset.pattern.permute.xlu0 0
        %1151 = vperm.xlu0 %1150, %v1137
        %v1152 = vpop.permute.xlu0 %1151
        %1155 = vset.pattern.permute.xlu0 0
        %1156 = vperm.xlu0 %1155, %v1138
        %v1157 = vpop.permute.xlu0 %1156
        %1160 = vset.pattern.permute.xlu0 0
        %1161 = vperm.xlu0 %1160, %v1139
        %v1162 = vpop.permute.xlu0 %1161
        %1165 = vset.pattern.permute.xlu0 0
        %1166 = vperm.xlu0 %1165, %v1140
        %v1167 = vpop.permute.xlu0 %1166
        %1170 = vset.pattern.permute.xlu0 0
        %1171 = vperm.xlu0 %1170, %v1141
        %v1172 = vpop.permute.xlu0 %1171
        %1175 = vset.pattern.permute.xlu0 0
        %1176 = vperm.xlu0 %1175, %v1142
        %v1177 = vpop.permute.xlu0 %1176
        %1180 = vset.pattern.permute.xlu0 0
        %1181 = vperm.xlu0 %1180, %v1143
        %v1182 = vpop.permute.xlu0 %1181
        %v1184 = vmul.f32 %v1147, %v846
        %v1185 = vmul.f32 %v1152, %v847
        %v1186 = vmul.f32 %v1157, %v848
        %v1187 = vmul.f32 %v1162, %v849
        %v1188 = vmul.f32 %v1167, %v850
        %v1189 = vmul.f32 %v1172, %v851
        %v1190 = vmul.f32 %v1177, %v852
        %v1191 = vmul.f32 %v1182, %v853
        %v1192 = vsel %vm515, %v1184, 0.0
        %v1193 = vrot.slane %v1192, 4
        %v1194 = vadd.f32 %v1192, %v1193
        %v1195 = vrot.slane %v1194, 2
        %v1196 = vadd.f32 %v1194, %v1195
        %v1197 = vrot.slane %v1196, 1
        %v1198 = vadd.f32 %v1196, %v1197
        %v1199 = vsel %vm515, %v1185, 0.0
        %v1200 = vrot.slane %v1199, 4
        %v1201 = vadd.f32 %v1199, %v1200
        %v1202 = vrot.slane %v1201, 2
        %v1203 = vadd.f32 %v1201, %v1202
        %v1204 = vrot.slane %v1203, 1
        %v1205 = vadd.f32 %v1203, %v1204
        %v1206 = vsel %vm515, %v1186, 0.0
        %v1207 = vrot.slane %v1206, 4
        %v1208 = vadd.f32 %v1206, %v1207
        %v1209 = vrot.slane %v1208, 2
        %v1210 = vadd.f32 %v1208, %v1209
        %v1211 = vrot.slane %v1210, 1
        %v1212 = vadd.f32 %v1210, %v1211
        %v1213 = vsel %vm515, %v1187, 0.0
        %v1214 = vrot.slane %v1213, 4
        %v1215 = vadd.f32 %v1213, %v1214
        %v1216 = vrot.slane %v1215, 2
        %v1217 = vadd.f32 %v1215, %v1216
        %v1218 = vrot.slane %v1217, 1
        %v1219 = vadd.f32 %v1217, %v1218
        %v1220 = vsel %vm515, %v1188, 0.0
        %v1221 = vrot.slane %v1220, 4
        %v1222 = vadd.f32 %v1220, %v1221
        %v1223 = vrot.slane %v1222, 2
        %v1224 = vadd.f32 %v1222, %v1223
        %v1225 = vrot.slane %v1224, 1
        %v1226 = vadd.f32 %v1224, %v1225
        %v1227 = vsel %vm515, %v1189, 0.0
        %v1228 = vrot.slane %v1227, 4
        %v1229 = vadd.f32 %v1227, %v1228
        %v1230 = vrot.slane %v1229, 2
        %v1231 = vadd.f32 %v1229, %v1230
        %v1232 = vrot.slane %v1231, 1
        %v1233 = vadd.f32 %v1231, %v1232
        %v1234 = vsel %vm515, %v1190, 0.0
        %v1235 = vrot.slane %v1234, 4
        %v1236 = vadd.f32 %v1234, %v1235
        %v1237 = vrot.slane %v1236, 2
        %v1238 = vadd.f32 %v1236, %v1237
        %v1239 = vrot.slane %v1238, 1
        %v1240 = vadd.f32 %v1238, %v1239
        %v1241 = vsel %vm515, %v1191, 0.0
        %v1242 = vrot.slane %v1241, 4
        %v1243 = vadd.f32 %v1241, %v1242
        %v1244 = vrot.slane %v1243, 2
        %v1245 = vadd.f32 %v1243, %v1244
        %v1246 = vrot.slane %v1245, 1
        %v1247 = vadd.f32 %v1245, %v1246
        %v1248 = vld [vmem:[%s8] sm:$0xff]
        %v1249 = vld [vmem:[%s8 + $0x8] sm:$0xff]
        %v1250 = vld [vmem:[%s8 + $0x10] sm:$0xff]
        %v1251 = vld [vmem:[%s8 + $0x18] sm:$0xff]
        %v1252 = vld [vmem:[%s9] sm:$0x1]
        %v1254 = vlaneseq
        %v1255 = vshrl.u32 %v1254, 7
        %v1256 = vsub.s32 0, %v1255
        %v1257 = vrot.slane %v1252, %v1256
        %v1267 = vsel %vm935, %v1205, %v1198
        %v1268 = vsel %vm937, %v1212, %v1267
        %v1269 = vsel %vm939, %v1219, %v1268
        %v1270 = vsel %vm941, %v1226, %v1269
        %v1271 = vsel %vm943, %v1233, %v1270
        %v1272 = vsel %vm945, %v1240, %v1271
        %v1273 = vsel %vm947, %v1247, %v1272
        %v1274 = vsel %vm515, %v1273, 0
        %1276 = vmatprep.subr.mxu0 0.0
        %1277 = vmatpush1.msra.mxu0 0.0
        %1278 = vmatprep.subr.mxu0 0.0
        %1279 = vmatpush1.msra.mxu0 0.0
        %1280 = vmatprep.subr.mxu0 0.0
        %1281 = vmatpush1.msra.mxu0 0.0
        %1282 = vmatprep.subr.mxu0 0.0
        %1283 = vmatpush1.msra.mxu0 0.0
        %1284 = vmatprep.subr.mxu0 0.0
        %1285 = vmatpush1.msra.mxu0 0.0
        %1286 = vmatprep.subr.mxu0 0.0
        %1287 = vmatpush1.msra.mxu0 0.0
        %1288 = vmatprep.subr.mxu0 0.0
        %1289 = vmatpush1.msra.mxu0 0.0
        %1290 = vmatprep.subr.mxu0 0.0
        %1291 = vmatpush1.msra.mxu0 0.0
        %1292 = vmatprep.subr.mxu0 0.0
        %1293 = vmatpush1.msra.mxu0 0.0
        %1294 = vmatprep.subr.mxu0 0.0
        %1295 = vmatpush1.msra.mxu0 0.0
        %1296 = vmatprep.subr.mxu0 0.0
        %1297 = vmatpush1.msra.mxu0 0.0
        %1298 = vmatprep.subr.mxu0 0.0
        %1299 = vmatpush1.msra.mxu0 0.0
        %1300 = vmatprep.subr.mxu0 0.0
        %1301 = vmatpush1.msra.mxu0 %v1251
        %1302 = vmatprep.subr.mxu0 0.0
        %1303 = vmatpush1.msra.mxu0 %v1250
        %1304 = vmatprep.subr.mxu0 0.0
        %1305 = vmatpush1.msra.mxu0 %v1249
        %1306 = vmatprep.subr.mxu0 0.0
        %1307 = vmatpush1.msra.mxu0 %v1248
        %1308 = vmatprep.subr.mxu0 0.0
        %1309 = vmatpush2.msra.mxu0 0.0
        %1310 = vmatprep.subr.mxu0 0.0
        %1311 = vmatpush2.msra.mxu0 0.0
        %1312 = vmatprep.subr.mxu0 0.0
        %1313 = vmatpush2.msra.mxu0 0.0
        %1314 = vmatprep.subr.mxu0 0.0
        %1315 = vmatpush2.msra.mxu0 0.0
        %1316 = vmatprep.subr.mxu0 0.0
        %1317 = vmatpush2.msra.mxu0 0.0
        %1318 = vmatprep.subr.mxu0 0.0
        %1319 = vmatpush2.msra.mxu0 0.0
        %1320 = vmatprep.subr.mxu0 0.0
        %1321 = vmatpush2.msra.mxu0 0.0
        %1322 = vmatprep.subr.mxu0 0.0
        %1323 = vmatpush2.msra.mxu0 0.0
        %1324 = vmatprep.subr.mxu0 0.0
        %1325 = vmatpush2.msra.mxu0 0.0
        %1326 = vmatprep.subr.mxu0 0.0
        %1327 = vmatpush2.msra.mxu0 0.0
        %1328 = vmatprep.subr.mxu0 0.0
        %1329 = vmatpush2.msra.mxu0 0.0
        %1330 = vmatprep.subr.mxu0 0.0
        %1331 = vmatpush2.msra.mxu0 0.0
        %1332 = vmatprep.subr.mxu0 0.0
        %1333 = vmatpush2.msra.mxu0 0.0
        %1334 = vmatprep.subr.mxu0 0.0
        %1335 = vmatpush2.msra.mxu0 0.0
        %1336 = vmatprep.subr.mxu0 0.0
        %1337 = vmatpush2.msra.mxu0 0.0
        %1338 = vmatprep.subr.mxu0 0.0
        %1339 = vmatpush2.msra.mxu0 0.0
        %1340 = vmatprep.mubr.f32.mxu0 0.0
        %1341 = vmatmul.mubr.f32.gmra.mxu0 %v1274
        %v1342 = vpop.f32.mrf.mxu0
        %v1343 = vadd.f32 %v1257, %v1342
        %v1344 = vpop.f32.mrf.mxu0
        %1345 = vdwg.mxu0
        %vm1346 = vcmask 48128
        %1347 = vst.msk [vmem:[%s457] sm:$0xff] %vm1346, %v1343
        %p1348 = scmp.lt.s32.totalorder %s27, 1
        %s1349 = scalar_select %p1348, %s27, 1
        %s1350 = smul.addr %s1349, 8
        %s1351 = scalar_lea.vmem %s10, %s1350
        // Predicated region
        $region73: #{tpu_custom_call.1} parent=59 // pred_check
          %p1352 = pneg %p270
        $region74: #{tpu_custom_call.1} parent=59 // pred_check_branch
          %1354 = sbr.rel (%p1352) target = $region76
        $region75: #{tpu_custom_call.1} parent=59 // pred_region
          _
        $region76: #{tpu_custom_call.1} parent=59 // pred_fallthru
          _
      $region60: #{tpu_custom_call.1} parent=5 // pred_fallthru
        _
      %p1355 = scmp.le.s32.totalorder 2, %s22
      // Predicated region
      $region77: #{tpu_custom_call.1} parent=5 // pred_check
        %p1356 = pneg %p1355
      $region78: #{tpu_custom_call.1} parent=5 // pred_check_branch
        %1358 = sbr.rel (%p1356) target = $region80
      $region79: #{tpu_custom_call.1} parent=5 // pred_region
        %s1359 = ssub.s32 %s22, 2
        // Predicated region
        $region81: #{tpu_custom_call.1} parent=79 // pred_check
          %p1360 = pneg %p276
        $region82: #{tpu_custom_call.1} parent=79 // pred_check_branch
          %1362 = sbr.rel (%p1360) target = $region84
        $region83: #{tpu_custom_call.1} parent=79 // pred_region
          %p1363 = scmp.lt.s32.totalorder %s28, 1
          %s1364 = scalar_select %p1363, %s28, 1
          %s1365 = smul.addr %s1364, 8
          %s1366 = scalar_lea.vmem %s10, %s1365
        $region84: #{tpu_custom_call.1} parent=79 // pred_fallthru
          _
      $region80: #{tpu_custom_call.1} parent=5 // pred_fallthru
        _
    $region6: #{tpu_custom_call.1} parent=1 // loop_footer
      %s26 = sadd.s32 1, %s22
    $region7: #{tpu_custom_call.1} parent=1 // loop_footer_branch
      %21 = sbr.rel target = $region3
    $region8: #{tpu_custom_call.1} parent=1 // loop_exit
      _
    %1367 = vsyncpa [#allocation3], 1
    %s1368 = scalar_lea.sflag [#allocation3], 1
    %1369 = vsyncpa %s1368, 1
    %1370 = vsyncpa [#allocation5], 1
    %s1371 = scalar_lea.sflag [#allocation5], 1
    %1372 = vsyncpa %s1371, 1

</llo_original>
